<compile_context>
chip_gen: v5e
topology: v5e:2x2
jax: 0.10.0
libtpu: 0.0.40
codegen_flags: <defaults>
</compile_context>

<pallas_src>
import jax
import jax.numpy as jnp
from jax.experimental import pallas as pl
from jax.experimental.pallas import tpu as pltpu

LANES = 128
_MIB = 1024 * 1024


def _hswish_kernel(x_ref, o_ref):
    # Compute in f32, cast on store (exact no-op for f32 inputs).
    x = x_ref[...].astype(jnp.float32)
    # relu6(x + 3) = clamp(x + 3, 0, 6); multiply by 1/6 (<= 1 ulp vs a true
    # divide, consistent with common PyTorch backend behavior).
    r6 = jnp.minimum(jnp.maximum(x + 3.0, 0.0), 6.0)
    o_ref[...] = (x * r6 * (1.0 / 6.0)).astype(o_ref.dtype)


def _hswish_jnp(x):
    # Fused XLA elementwise pass — used only for non-lane-aligned sizes.
    return x * jnp.clip(x + 3.0, 0.0, 6.0) / 6.0


def _round_up(a, b):
    return ((a + b - 1) // b) * b


def _chip_config():
    """Returns (tile_byte_budget, tensorcores_per_chip) for the attached TPU."""
    kind = ""
    try:
        kind = jax.devices()[0].device_kind.lower()
    except Exception:
        pass
    is_v7 = ("v7" in kind) or ("tpu7" in kind)
    # 2 MiB tiles -> 8 MiB double-buffered footprint: under the default
    # scoped-VMEM limit on v5e (16 MiB), v6e (32 MiB) and v7x (32 MiB).
    # On v7x a 2 MiB tile streams in <1 us so the ~0.35 us/step overhead would
    # show; 4 MiB tiles (16 MiB footprint) keep DMA time >> step overhead while
    # still fitting the default limit (no vmem_limit_bytes override needed).
    tile_bytes = 4 * _MIB if is_v7 else 2 * _MIB
    num_cores = 2 if is_v7 else 1
    return tile_bytes, num_cores


def hswish(x: jnp.ndarray) -> jnp.ndarray:
    """Elementwise hard-swish matching PyTorch Hswish: x * relu6(x + 3) / 6."""
    orig_shape = x.shape
    dtype = x.dtype
    n = x.size
    dtype_bytes = jnp.dtype(dtype).itemsize

    if n == 0:
        return x

    if n % LANES != 0:
        # Rare non-lane-aligned case: a full-tensor jnp.pad plus a post-kernel
        # slice would each add a full HBM read+write (~3x total traffic), so a
        # single fused XLA elementwise pass is strictly faster here.
        # TODO(synk): fold the ragged tail into the pallas_call with a masked
        # final block if full Pallas coverage of non-aligned sizes is required.
        return _hswish_jnp(x)

    rows = n // LANES
    x2d = x.reshape(rows, LANES)  # contiguous reshape: free

    # Sublane multiple for the block's second-to-last dim: 8 for 4-byte,
    # 16 for 2-byte, 32 for 1-byte dtypes (packed sublane layouts).
    sublane = 8 * max(1, 4 // dtype_bytes)

    tile_bytes, num_cores = _chip_config()

    # Byte-budgeted tile: the same ~2-4 MiB per tile regardless of dtype
    # (f32 -> 4096/8192 rows, bf16 -> 8192/16384 rows, int8 -> 16384/32768).
    budget_rows = max(sublane, (tile_bytes // (LANES * dtype_bytes)) // sublane * sublane)
    row_tile = min(budget_rows, _round_up(rows, sublane))

    if num_cores > 1 and rows > sublane:
        # Ensure a multi-TensorCore chip gets >= num_cores grid steps to shard
        # whenever there is enough data to split (no-op for large inputs).
        per_core_rows = max(sublane, _round_up(pl.cdiv(rows, num_cores), sublane))
        row_tile = min(row_tile, per_core_rows)

    grid = (pl.cdiv(rows, row_tile),)

    if num_cores > 1 and grid[0] >= num_cores:
        semantics = (pltpu.CORE_PARALLEL,)   # shard the grid axis across TCs (v7x)
    else:
        semantics = (pltpu.PARALLEL,)

    cost = pl.CostEstimate(
        flops=5 * n,
        transcendentals=0,
        bytes_accessed=2 * n * dtype_bytes,
    )

    out2d = pl.pallas_call(
        _hswish_kernel,
        out_shape=jax.ShapeDtypeStruct((rows, LANES), dtype),
        grid=grid,
        in_specs=[pl.BlockSpec((row_tile, LANES), lambda i: (i, 0))],
        out_specs=pl.BlockSpec((row_tile, LANES), lambda i: (i, 0)),
        compiler_params=pltpu.CompilerParams(
            dimension_semantics=semantics,
        ),
        cost_estimate=cost,
    )(x2d)

    return out2d.reshape(orig_shape)


def _reference_hswish(x):
    return x * jnp.clip(x + 3.0, 0.0, 6.0) / 6.0


if __name__ == "__main__":
    key = jax.random.PRNGKey(0)
    # NCHW conv activation, consistent with OFA's usage of Hswish.
    x = jax.random.normal(key, (2, 4, 16, 16), dtype=jnp.float32) * 4.0

    y = hswish(x)
    jax.block_until_ready(y)

    y_ref = _reference_hswish(x)
    assert y.shape == x.shape and y.dtype == x.dtype
    assert jnp.allclose(y, y_ref, atol=1e-6, rtol=1e-6)

    # Moderate lane-aligned input to exercise a multi-step grid (and, on v7x,
    # the CORE_PARALLEL split).
    x1 = jax.random.normal(jax.random.PRNGKey(1), (2, 32, 128, 128),
                           dtype=jnp.float32) * 4.0
    y1 = hswish(x1)
    jax.block_until_ready(y1)
    assert jnp.allclose(y1, _reference_hswish(x1), atol=1e-6, rtol=1e-6)

    # bf16 path: byte-budgeted tile + compute-in-f32 / cast-on-store.
    xb = jax.random.normal(jax.random.PRNGKey(2), (2, 4, 16, 16),
                           dtype=jnp.bfloat16) * 4.0
    yb = hswish(xb)
    jax.block_until_ready(yb)
    assert yb.dtype == jnp.bfloat16
    assert jnp.allclose(yb.astype(jnp.float32),
                        _reference_hswish(xb.astype(jnp.float32)),
                        atol=2e-2, rtol=2e-2)

    # Non-lane-aligned size takes the fused fallback (no pad/slice copies).
    x2 = jax.random.normal(jax.random.PRNGKey(3), (3, 5, 7), dtype=jnp.float32)
    y2 = hswish(x2)
    jax.block_until_ready(y2)
    assert jnp.allclose(y2, _reference_hswish(x2), atol=1e-6, rtol=1e-6)

    print("KERNEL_OK")
</pallas_src>

<mosaic_0001>
module attributes {stable_mosaic.version = 11 : i64} {
  func.func @_hswish_kernel(%arg0: i32, %arg1: memref<16x128xf32, #tpu.memory_space<vmem>>, %arg2: memref<16x128xf32, #tpu.memory_space<vmem>>) attributes {dimension_semantics = [#tpu.dimension_semantics<parallel>], iteration_bounds = array<i64: 1>, scalar_prefetch = 0 : i64, scratch_operands = 0 : i64, tpu.core_type = #tpu.core_type<tc>, window_params = [{transform_indices = @transform_0, window_bounds = array<i64: 16, 128>}, {transform_indices = @transform_1, window_bounds = array<i64: 16, 128>}]} {
    %c0 = arith.constant 0 : index
    %c0_0 = arith.constant 0 : index
    %0 = vector.load %arg1[%c0, %c0_0] : memref<16x128xf32, #tpu.memory_space<vmem>>, vector<16x128xf32>
    %cst = arith.constant 3.000000e+00 : f32
    %1 = vector.broadcast %cst : f32 to vector<16x128xf32>
    %2 = arith.addf %0, %1 : vector<16x128xf32>
    %cst_1 = arith.constant 0.000000e+00 : f32
    %3 = vector.broadcast %cst_1 : f32 to vector<16x128xf32>
    %4 = arith.maximumf %2, %3 : vector<16x128xf32>
    %cst_2 = arith.constant 6.000000e+00 : f32
    %5 = vector.broadcast %cst_2 : f32 to vector<16x128xf32>
    %6 = arith.minimumf %4, %5 : vector<16x128xf32>
    %7 = arith.mulf %0, %6 : vector<16x128xf32>
    %cst_3 = arith.constant 0.166666672 : f32
    %8 = vector.broadcast %cst_3 : f32 to vector<16x128xf32>
    %9 = arith.mulf %7, %8 : vector<16x128xf32>
    %c0_4 = arith.constant 0 : index
    %c0_5 = arith.constant 0 : index
    %10 = vector.load %arg2[%c0_4, %c0_5] : memref<16x128xf32, #tpu.memory_space<vmem>>, vector<16x128xf32>
    tpu.vector_store %arg2[%c0_4, %c0_5], %9 {strides = array<i32>} : memref<16x128xf32, #tpu.memory_space<vmem>>, vector<16x128xf32>,
    return
  }
  func.func @transform_0(%arg0: i32) -> (i32, i32) {
    %c0_i32 = arith.constant 0 : i32
    %c0_i32_0 = arith.constant 0 : i32
    return %arg0, %c0_i32 : i32, i32
  }
  func.func @transform_1(%arg0: i32) -> (i32, i32) {
    %c0_i32 = arith.constant 0 : i32
    %c0_i32_0 = arith.constant 0 : i32
    return %arg0, %c0_i32 : i32, i32
  }
}

</mosaic_0001>

<llo_original>
// kernel: tpu_custom_call.1
$region0: #{tpu_custom_call.1}
  #allocation0 [shape = 'u32[]', space=smem, size = 0x4, offset = 0x4, fixed_abs, tag = 'smem constant byte address 0x4 - core index']
  #allocation1 [shape = 'u32[72,128]{1,0:T(1,128)}', space=vmem, size = 0x9000, scoped, tag = 'internal scratch']
  %s0 = inlined_call_operand.hbm [shape: f32[16,128], index: 0, kind: input, shape index: {}]
  %s1 = inlined_call_operand.hbm [shape: f32[16,128], index: 1, kind: output, shape index: {}]
  %s2 = sld [smem:[#allocation0]]
  $region18: #{tpu_custom_call.1} parent=0
    _
  %s4 = ssub.s32 1, %s2
  %s5 = scalar_select 0, %s4, %s2
  $region1: #{tpu_custom_call.1} parent=0
    #allocation2 [shape = 'u8[8192]{0}', space=vmem, size = 0x2000, scoped, tag = 'input window, operand 0, single buffered']
    #allocation3 [shape = 's32[1]{0}', space=sflag, size = 0x4, scoped, tag = 'scoped memory for tpu_custom_call.1']
    #allocation4 [shape = 's32[1]{0}', space=sflag, size = 0x4, scoped, tag = 'scoped memory for tpu_custom_call.1']
    #allocation5 [shape = 'u8[8192]{0}', space=vmem, size = 0x2000, scoped, tag = 'output window, operand 0, single buffered']
    %6 = vsyncpa [#allocation3], 0
    %7 = vsyncpa [#allocation4], 0
    // Predicated region
    $region2: #{tpu_custom_call.1} parent=1 // pred_check
      _
    $region3: #{tpu_custom_call.1} parent=1 // pred_check_branch
      %9 = sbr.rel (0) target = $region5
    $region4: #{tpu_custom_call.1} parent=1 // pred_region
      %11 = vsyncadd [#allocation3], 0
      %s12 = sshll.u32 %s0, 4
      %s13 = int_to_ptr.hbm [resolvable:$true] %s12
      %s14 = sshll.u32 [#allocation2], 4
      %s15 = int_to_ptr.vmem [resolvable:$true] %s14
      %20 = dma.hbm_to_vmem [thread:$0]  %s13, 256, %s15, [#allocation3], 128, 128, 8
    $region5: #{tpu_custom_call.1} parent=1 // pred_fallthru
      _
    // Predicated region
    $region6: #{tpu_custom_call.1} parent=1 // pred_check
      _
    $region7: #{tpu_custom_call.1} parent=1 // pred_check_branch
      %22 = sbr.rel (0) target = $region9
    $region8: #{tpu_custom_call.1} parent=1 // pred_region
      %24 = dma.done [#allocation3], 256
    $region9: #{tpu_custom_call.1} parent=1 // pred_fallthru
      _
    %v25 = vld [vmem:[#allocation2] sm:$0xff]
    %v26 = vld [vmem:[#allocation2 + $0x8] sm:$0xff]
    %v27 = vadd.f32 %v25, 3.0
    %v28 = vadd.f32 %v26, 3.0
    %v29 = vmax.f32 %v27, 0.0
    %v30 = vmax.f32 %v28, 0.0
    %v31 = vmin.f32 %v29, 6.0
    %v32 = vmin.f32 %v30, 6.0
    %v33 = vmul.f32 %v25, %v31
    %v34 = vmul.f32 %v26, %v32
    %v35 = vmul.f32 %v33, 0.16666667
    %v36 = vmul.f32 %v34, 0.16666667
    %37 = vst [vmem:[#allocation5] sm:$0xff] %v35
    %38 = vst [vmem:[#allocation5 + $0x8] sm:$0xff] %v36
    // Predicated region
    $region10: #{tpu_custom_call.1} parent=1 // pred_check
      _
    $region11: #{tpu_custom_call.1} parent=1 // pred_check_branch
      %40 = sbr.rel (0) target = $region13
    $region12: #{tpu_custom_call.1} parent=1 // pred_region
      %42 = vsyncadd [#allocation4], 0
      %s43 = sshll.u32 [#allocation5], 4
      %s44 = int_to_ptr.vmem [resolvable:$true] %s43
      %s45 = sshll.u32 %s1, 4
      %s46 = int_to_ptr.hbm [resolvable:$true] %s45
      %51 = dma.vmem_to_hbm [thread:$0]  %s44, 256, %s46, [#allocation4], 128, 128, 8
    $region13: #{tpu_custom_call.1} parent=1 // pred_fallthru
      _
    // Predicated region
    $region14: #{tpu_custom_call.1} parent=1 // pred_check
      _
    $region15: #{tpu_custom_call.1} parent=1 // pred_check_branch
      %53 = sbr.rel (0) target = $region17
    $region16: #{tpu_custom_call.1} parent=1 // pred_region
      %55 = dma.done [#allocation4], 256
    $region17: #{tpu_custom_call.1} parent=1 // pred_fallthru
      _
    %56 = vsyncpa [#allocation3], 1
    %57 = vsyncpa [#allocation4], 1

</llo_original>
